<compile_context>
chip_gen: v7x
topology: tpu7x:2x2x1
jax: 0.10.0
libtpu: 0.0.40
codegen_flags: <defaults>
</compile_context>

<pallas_src>
import functools

import jax
import jax.numpy as jnp
from jax import lax
from jax.experimental import pallas as pl
from jax.experimental.pallas import tpu as pltpu


def _round_up(x, m):
    return (x + m - 1) // m * m


# -----------------------------------------------------------------------------
# Fused kernel: for every logits tensor i (block (1, C, tl), classes on
# sublanes, pixels on lanes) accumulate per-pixel cross-entropy into output row
# i; for every "KL" tensor additionally accumulate KL(softmax(teacher/T) ||
# softmax(student/T)) into output row num_logits + k.  The output block
# (1, rows, tl) is resident across the pixel-tile grid axis (accumulator
# pattern) and written back per batch element.
# -----------------------------------------------------------------------------
def _fused_loss_kernel(labels_ref, *refs, num_logits, teacher_pos, kl_positions,
                       inv_T, hw, tl, need_mask):
    logits_refs = refs[:num_logits]
    out_ref = refs[num_logits]

    j = pl.program_id(1)

    @pl.when(j == 0)
    def _init():
        out_ref[...] = jnp.zeros_like(out_ref)

    C = logits_refs[0].shape[1]
    lbl = labels_ref[0]                                         # (1, tl) int32
    cls = lax.broadcasted_iota(jnp.int32, (C, tl), 0)           # class ids (sublanes)
    onehot = (cls == lbl).astype(jnp.float32)                   # (C, tl)

    if need_mask:
        pix = j * tl + lax.broadcasted_iota(jnp.int32, (1, tl), 1)
        valid = pix < hw                                        # (1, tl) bool
        validf = valid.astype(jnp.float32)

    q = None        # softmax(teacher / T), (C, tl)
    q_logq = None   # sum_c q * log q, (1, tl)

    for i in range(num_logits):
        x = logits_refs[i][0].astype(jnp.float32)               # (C, tl)
        if need_mask:
            x = jnp.where(valid, x, 0.0)                        # keep padded lanes finite

        # ---- cross entropy (mean taken in glue) -------------------------------
        m = jnp.max(x, axis=0, keepdims=True)                   # (1, tl)
        e = jnp.exp(x - m)
        se = jnp.sum(e, axis=0, keepdims=True)
        lse = jnp.log(se) + m
        picked = jnp.sum(onehot * x, axis=0, keepdims=True)
        ce = lse - picked                                       # (1, tl)
        if need_mask:
            ce = ce * validf
        out_ref[0, pl.ds(i, 1), :] += ce

        # ---- teacher temperature-softmax (computed once, reused by all areas) --
        if kl_positions and i == teacher_pos:
            t = x * inv_T
            tm = jnp.max(t, axis=0, keepdims=True)
            t_shift = t - tm
            t_exp = jnp.exp(t_shift)
            t_sum = jnp.sum(t_exp, axis=0, keepdims=True)
            inv_ts = pl.reciprocal(t_sum, approx=True)
            inv_ts = inv_ts * (2.0 - t_sum * inv_ts)            # Newton refine (full f32 acc)
            q = t_exp * inv_ts
            q_logq = jnp.sum(t_exp * t_shift, axis=0, keepdims=True) * inv_ts \
                - jnp.log(t_sum)

        # ---- KL( softmax(teacher/T) || softmax(student/T) ) --------------------
        if i in kl_positions:
            s = x * inv_T
            sm = jnp.max(s, axis=0, keepdims=True)
            s_lse = jnp.log(jnp.sum(jnp.exp(s - sm), axis=0, keepdims=True)) + sm
            # sum_c q*(log q - log p) = q_logq - sum_c q*s + lse(s)   (sum_c q = 1)
            kl = q_logq - jnp.sum(q * s, axis=0, keepdims=True) + s_lse
            if need_mask:
                kl = kl * validf
            krow = num_logits + kl_positions.index(i)
            out_ref[0, pl.ds(krow, 1), :] += kl


@functools.partial(
    jax.jit,
    static_argnames=("teacher_pos", "kl_positions", "temperature", "tl_desired"))
def _fused_losses(labels_nhw, logits_list, *, teacher_pos, kl_positions,
                  temperature, tl_desired=2048):
    """Returns (ce_means[L], kl_batchmean_T2[K]) for a list of NCHW logits."""
    logits_list = tuple(logits_list)
    N, C, H, W = logits_list[0].shape
    HW = H * W
    P = N * HW
    L = len(logits_list)
    K = len(kl_positions)
    rows = L + K
    if kl_positions:
        assert teacher_pos is not None and teacher_pos < min(kl_positions)

    # ---- tile sizing: lane-dense, as large as a generation-safe VMEM budget ----
    tl = min(int(tl_desired), _round_up(HW, 128))
    def _buf_bytes(t):  # double-buffered inputs + resident output block
        return 4 * t * (2 * (L * C + 1) + rows)
    while tl > 128 and _buf_bytes(tl) > 20 * 1024 * 1024:
        tl = max(128, _round_up(tl // 2, 128))
    num_j = pl.cdiv(HW, tl)
    need_mask = (num_j * tl) != HW

    # free reshapes: native NCHW layout, no transpose / extra HBM traffic
    labels3 = labels_nhw.reshape(N, 1, HW).astype(jnp.int32)
    logits3 = [x.reshape(N, C, HW) for x in logits_list]

    kernel = functools.partial(
        _fused_loss_kernel,
        num_logits=L, teacher_pos=teacher_pos, kl_positions=tuple(kl_positions),
        inv_T=float(1.0 / temperature), hw=HW, tl=tl, need_mask=need_mask)

    in_specs = [pl.BlockSpec((1, 1, tl), lambda n, j: (n, 0, j))]
    in_specs += [pl.BlockSpec((1, C, tl), lambda n, j: (n, 0, j)) for _ in range(L)]
    out_spec = pl.BlockSpec((1, rows, tl), lambda n, j: (n, 0, 0))

    partials = pl.pallas_call(
        kernel,
        out_shape=jax.ShapeDtypeStruct((N, rows, tl), jnp.float32),
        grid_spec=pltpu.PrefetchScalarGridSpec(
            num_scalar_prefetch=0,
            grid=(N, num_j),
            in_specs=in_specs,
            out_specs=out_spec,
        ),
        compiler_params=pltpu.CompilerParams(
            dimension_semantics=("parallel", "arbitrary"),
            vmem_limit_bytes=32 * 1024 * 1024,
        ),
    )(labels3, *logits3)

    sums = jnp.sum(partials, axis=(0, 2))                     # (L + K,)
    ce_means = sums[:L] / jnp.float32(P)                      # CrossEntropy 'mean'
    kl_vals = sums[L:] * jnp.float32(temperature * temperature) / jnp.float32(N)
    return ce_means, kl_vals


# -----------------------------------------------------------------------------
# Module-equivalent wrapper (no learnable parameters in the original module).
# -----------------------------------------------------------------------------
class DynamicEnsembleLossProgress:
    def __init__(self, max_alpha=0.3, max_beta=0.1, max_loss_estimate=3.0,
                 use_area_loss=True, warmup_epochs=0, transition_epochs=5,
                 loss_global_based=False):
        self.max_alpha = max_alpha
        self.max_beta = max_beta
        self.max_loss_estimate = max_loss_estimate
        self.use_area_loss = use_area_loss
        self.warmup_epochs = warmup_epochs
        self.transition_epochs = transition_epochs
        self.epoch = 0
        self.loss_global_based = loss_global_based

    def step_epoch(self):
        self.epoch += 1

    def __call__(self, outputs, labels):
        progress = min(1.0, max(0.0, (self.epoch - self.warmup_epochs)
                                / self.transition_epochs))

        has_teacher = 'distill_teacher' in outputs
        teacher_ok = has_teacher and outputs['distill_teacher'] is not None
        area_active = (progress > 0.0 and self.use_area_loss
                       and 'area_logits' in outputs
                       and outputs['area_logits'] is not None)

        # Build the list of logits tensors that participate (all get CE; area
        # heads additionally get KL vs the teacher) -> ONE fused pallas_call.
        logits_list = [outputs['out']]
        teacher_pos = None
        if has_teacher:
            teacher_pos = len(logits_list)
            logits_list.append(outputs['distill_teacher'])
        area_positions = []
        if area_active:
            for a in outputs['area_logits']:
                area_positions.append(len(logits_list))
                logits_list.append(a)
        kl_positions = tuple(area_positions) if (area_active and teacher_ok) else ()

        T = 4.0
        ce_means, kl_vals = _fused_losses(
            labels, tuple(logits_list),
            teacher_pos=teacher_pos, kl_positions=kl_positions, temperature=T)

        loss_fused = ce_means[0]
        loss_global = ce_means[teacher_pos] if has_teacher else jnp.float32(0.0)

        # torch ".item()" under no_grad -> host scalar.  All device work was
        # dispatched in the single fused pallas_call above, so this sync does
        # not serialize any additional kernels.
        loss_factor = 1.0 - min(float(loss_fused) / self.max_loss_estimate, 1.0)

        fused_weight = 0.2 + 0.8 * progress
        global_weight = 1.0 - fused_weight
        alpha = self.max_alpha * loss_factor * progress
        beta = self.max_beta * loss_factor * progress if self.use_area_loss else 0.0
        gamma = 0.1 * progress

        loss_total = fused_weight * loss_fused + global_weight * loss_global
        loss_area = jnp.float32(0.0)
        loss_area_distill = jnp.float32(0.0)
        loss_entropy = jnp.float32(0.0)     # constant 0 in the reference
        loss_diversity = jnp.float32(0.0)   # constant 0 in the reference

        if area_active:
            n_area = len(area_positions)
            loss_area = sum(ce_means[p] for p in area_positions) / n_area
            if teacher_ok:
                loss_area_distill = jnp.sum(kl_vals) / n_area
            # Reproduce the reference exactly (area terms are added twice).
            loss_total = loss_total + beta * loss_area
            loss_total = loss_total + gamma * loss_area_distill
            loss_total = loss_total + 0.01 * loss_diversity
            loss_total = loss_total + 0.01 * loss_entropy
            loss_total = loss_total + beta * loss_area + gamma * loss_area_distill

        return {
            'loss': loss_total,
            'loss_fused': loss_fused,
            'loss_global': loss_global,
            'loss_area': loss_area,
            'loss_area_distill': loss_area_distill,
            'alpha': alpha,
            'beta': beta,
            'gamma': gamma,
            'fused_weight': fused_weight,
            'progress': progress,
        }


if __name__ == "__main__":
    key = jax.random.PRNGKey(0)
    N, C, H, W = 2, 16, 16, 16          # P = N*H*W = 512 pixels, 16 classes

    k1, k2, k3, k4, k5 = jax.random.split(key, 5)
    out = jax.random.normal(k1, (N, C, H, W), dtype=jnp.float32)
    teacher = jax.random.normal(k2, (N, C, H, W), dtype=jnp.float32)
    area0 = jax.random.normal(k3, (N, C, H, W), dtype=jnp.float32)
    area1 = jax.random.normal(k4, (N, C, H, W), dtype=jnp.float32)
    labels = jax.random.randint(k5, (N, H, W), 0, C, dtype=jnp.int32)

    outputs = {
        'out': out,
        'distill_teacher': teacher,
        'area_logits': [area0, area1],
    }

    loss_mod = DynamicEnsembleLossProgress()
    for _ in range(3):                  # progress = 0.6 > 0: area/distill branch runs
        loss_mod.step_epoch()

    result = loss_mod(outputs, labels)
    jax.block_until_ready(result['loss'])

    # ---- pure-JAX reference check (correctness before perf) -------------------
    def ref_ce(logits, lab):
        xt = jnp.transpose(logits, (0, 2, 3, 1)).reshape(-1, logits.shape[1])
        lf = lab.reshape(-1)
        lse = jax.scipy.special.logsumexp(xt, axis=-1)
        picked = jnp.take_along_axis(xt, lf[:, None], axis=-1)[:, 0]
        return jnp.mean(lse - picked)

    def ref_kl(stud, teach, T):
        s = jnp.transpose(stud, (0, 2, 3, 1)).reshape(-1, stud.shape[1]) / T
        t = jnp.transpose(teach, (0, 2, 3, 1)).reshape(-1, teach.shape[1]) / T
        q = jax.nn.softmax(t, axis=-1)
        kl = jnp.sum(q * (jax.nn.log_softmax(t, axis=-1) - jax.nn.log_softmax(s, axis=-1)))
        return kl / stud.shape[0] * (T * T)

    checks = [
        (float(result['loss_fused']), float(ref_ce(out, labels))),
        (float(result['loss_global']), float(ref_ce(teacher, labels))),
        (float(result['loss_area']),
         float((ref_ce(area0, labels) + ref_ce(area1, labels)) / 2.0)),
        (float(result['loss_area_distill']),
         float((ref_kl(area0, teacher, 4.0) + ref_kl(area1, teacher, 4.0)) / 2.0)),
    ]
    for got, want in checks:
        assert abs(got - want) <= 1e-4 + 1e-4 * abs(want), (got, want)

    print("KERNEL_OK")
</pallas_src>

<mosaic_0001>
module attributes {stable_mosaic.version = 11 : i64} {
  func.func @_fused_loss_kernel(%arg0: i32, %arg1: i32, %arg2: memref<1x1x256xi32, #tpu.memory_space<vmem>>, %arg3: memref<1x16x256xf32, #tpu.memory_space<vmem>>, %arg4: memref<1x16x256xf32, #tpu.memory_space<vmem>>, %arg5: memref<1x16x256xf32, #tpu.memory_space<vmem>>, %arg6: memref<1x16x256xf32, #tpu.memory_space<vmem>>, %arg7: memref<1x6x256xf32, #tpu.memory_space<vmem>>) attributes {dimension_semantics = [#tpu.dimension_semantics<parallel>, #tpu.dimension_semantics<arbitrary>], iteration_bounds = array<i64: 2, 1>, scalar_prefetch = 0 : i64, scratch_operands = 0 : i64, tpu.core_type = #tpu.core_type<tc>, window_params = [{transform_indices = @transform_0, window_bounds = array<i64: 1, 1, 256>}, {transform_indices = @transform_1, window_bounds = array<i64: 1, 16, 256>}, {transform_indices = @transform_2, window_bounds = array<i64: 1, 16, 256>}, {transform_indices = @transform_3, window_bounds = array<i64: 1, 16, 256>}, {transform_indices = @transform_4, window_bounds = array<i64: 1, 16, 256>}, {transform_indices = @transform_5, window_bounds = array<i64: 1, 6, 256>}]} {
    %c0_i32 = arith.constant 0 : i32
    %0 = arith.cmpi eq, %arg1, %c0_i32 : i32
    %1 = arith.extui %0 : i1 to i32
    %c0_i32_0 = arith.constant 0 : i32
    %2 = arith.cmpi ne, %1, %c0_i32_0 : i32
    scf.if %2 {
      %cst_70 = arith.constant 0.000000e+00 : f32
      %160 = vector.broadcast %cst_70 : f32 to vector<1x6x256xf32>
      %c0_71 = arith.constant 0 : index
      %c0_72 = arith.constant 0 : index
      %c0_73 = arith.constant 0 : index
      %161 = vector.load %arg7[%c0_71, %c0_72, %c0_73] : memref<1x6x256xf32, #tpu.memory_space<vmem>>, vector<1x6x256xf32>
      tpu.vector_store %arg7[%c0_71, %c0_72, %c0_73], %160 {strides = array<i32>} : memref<1x6x256xf32, #tpu.memory_space<vmem>>, vector<1x6x256xf32>,
    } else {
    }
    %c0 = arith.constant 0 : index
    %c0_1 = arith.constant 0 : index
    %c0_2 = arith.constant 0 : index
    %3 = vector.load %arg2[%c0, %c0_1, %c0_2] : memref<1x1x256xi32, #tpu.memory_space<vmem>>, vector<1x1x256xi32>
    %4 = vector.shape_cast %3 : vector<1x1x256xi32> to vector<1x256xi32>
    %5 = tpu.iota {dimensions = array<i32: 0>} : vector<16x256xi32>
    %6 = vector.broadcast %4 : vector<1x256xi32> to vector<16x256xi32>
    %7 = arith.cmpi eq, %5, %6 : vector<16x256xi32>
    %8 = arith.extui %7 : vector<16x256xi1> to vector<16x256xi32>
    %9 = arith.sitofp %8 : vector<16x256xi32> to vector<16x256xf32>
    %c0_3 = arith.constant 0 : index
    %c0_4 = arith.constant 0 : index
    %c0_5 = arith.constant 0 : index
    %10 = vector.load %arg3[%c0_3, %c0_4, %c0_5] : memref<1x16x256xf32, #tpu.memory_space<vmem>>, vector<1x16x256xf32>
    %11 = vector.shape_cast %10 : vector<1x16x256xf32> to vector<16x256xf32>
    %cst = arith.constant dense<0xFF800000> : vector<256xf32>
    %12 = vector.multi_reduction <maximumf>, %11, %cst [0] : vector<16x256xf32> to vector<256xf32>
    %13 = vector.shape_cast %12 : vector<256xf32> to vector<1x256xf32>
    %14 = vector.broadcast %13 : vector<1x256xf32> to vector<16x256xf32>
    %15 = arith.subf %11, %14 : vector<16x256xf32>
    %16 = math.exp %15 : vector<16x256xf32>
    %cst_6 = arith.constant dense<0.000000e+00> : vector<256xf32>
    %17 = vector.multi_reduction <add>, %16, %cst_6 [0] : vector<16x256xf32> to vector<256xf32>
    %18 = vector.shape_cast %17 : vector<256xf32> to vector<1x256xf32>
    %19 = math.log %18 : vector<1x256xf32>
    %20 = arith.addf %19, %13 : vector<1x256xf32>
    %21 = arith.mulf %9, %11 : vector<16x256xf32>
    %cst_7 = arith.constant dense<0.000000e+00> : vector<256xf32>
    %22 = vector.multi_reduction <add>, %21, %cst_7 [0] : vector<16x256xf32> to vector<256xf32>
    %23 = vector.shape_cast %22 : vector<256xf32> to vector<1x256xf32>
    %24 = arith.subf %20, %23 : vector<1x256xf32>
    %c0_8 = arith.constant 0 : index
    %c0_9 = arith.constant 0 : index
    %c0_10 = arith.constant 0 : index
    %25 = vector.load %arg7[%c0_8, %c0_9, %c0_10] : memref<1x6x256xf32, #tpu.memory_space<vmem>>, vector<1x1x256xf32>
    %26 = vector.shape_cast %25 : vector<1x1x256xf32> to vector<1x256xf32>
    %27 = arith.addf %26, %24 : vector<1x256xf32>
    %c0_11 = arith.constant 0 : index
    %c0_12 = arith.constant 0 : index
    %c0_13 = arith.constant 0 : index
    %28 = vector.load %arg7[%c0_11, %c0_12, %c0_13] : memref<1x6x256xf32, #tpu.memory_space<vmem>>, vector<1x1x256xf32>
    %29 = vector.shape_cast %28 : vector<1x1x256xf32> to vector<1x256xf32>
    %30 = vector.shape_cast %27 : vector<1x256xf32> to vector<1x1x256xf32>
    tpu.vector_store %arg7[%c0_11, %c0_12, %c0_13], %30 {strides = array<i32>} : memref<1x6x256xf32, #tpu.memory_space<vmem>>, vector<1x1x256xf32>,
    %c0_14 = arith.constant 0 : index
    %c0_15 = arith.constant 0 : index
    %c0_16 = arith.constant 0 : index
    %31 = vector.load %arg4[%c0_14, %c0_15, %c0_16] : memref<1x16x256xf32, #tpu.memory_space<vmem>>, vector<1x16x256xf32>
    %32 = vector.shape_cast %31 : vector<1x16x256xf32> to vector<16x256xf32>
    %cst_17 = arith.constant dense<0xFF800000> : vector<256xf32>
    %33 = vector.multi_reduction <maximumf>, %32, %cst_17 [0] : vector<16x256xf32> to vector<256xf32>
    %34 = vector.shape_cast %33 : vector<256xf32> to vector<1x256xf32>
    %35 = vector.broadcast %34 : vector<1x256xf32> to vector<16x256xf32>
    %36 = arith.subf %32, %35 : vector<16x256xf32>
    %37 = math.exp %36 : vector<16x256xf32>
    %cst_18 = arith.constant dense<0.000000e+00> : vector<256xf32>
    %38 = vector.multi_reduction <add>, %37, %cst_18 [0] : vector<16x256xf32> to vector<256xf32>
    %39 = vector.shape_cast %38 : vector<256xf32> to vector<1x256xf32>
    %40 = math.log %39 : vector<1x256xf32>
    %41 = arith.addf %40, %34 : vector<1x256xf32>
    %42 = arith.mulf %9, %32 : vector<16x256xf32>
    %cst_19 = arith.constant dense<0.000000e+00> : vector<256xf32>
    %43 = vector.multi_reduction <add>, %42, %cst_19 [0] : vector<16x256xf32> to vector<256xf32>
    %44 = vector.shape_cast %43 : vector<256xf32> to vector<1x256xf32>
    %45 = arith.subf %41, %44 : vector<1x256xf32>
    %c0_20 = arith.constant 0 : index
    %c1 = arith.constant 1 : index
    %c0_21 = arith.constant 0 : index
    %46 = vector.load %arg7[%c0_20, %c1, %c0_21] : memref<1x6x256xf32, #tpu.memory_space<vmem>>, vector<1x1x256xf32>
    %47 = vector.shape_cast %46 : vector<1x1x256xf32> to vector<1x256xf32>
    %48 = arith.addf %47, %45 : vector<1x256xf32>
    %c0_22 = arith.constant 0 : index
    %c1_23 = arith.constant 1 : index
    %c0_24 = arith.constant 0 : index
    %49 = vector.load %arg7[%c0_22, %c1_23, %c0_24] : memref<1x6x256xf32, #tpu.memory_space<vmem>>, vector<1x1x256xf32>
    %50 = vector.shape_cast %49 : vector<1x1x256xf32> to vector<1x256xf32>
    %51 = vector.shape_cast %48 : vector<1x256xf32> to vector<1x1x256xf32>
    tpu.vector_store %arg7[%c0_22, %c1_23, %c0_24], %51 {strides = array<i32>} : memref<1x6x256xf32, #tpu.memory_space<vmem>>, vector<1x1x256xf32>,
    %cst_25 = arith.constant 2.500000e-01 : f32
    %52 = vector.broadcast %cst_25 : f32 to vector<16x256xf32>
    %53 = arith.mulf %32, %52 : vector<16x256xf32>
    %cst_26 = arith.constant dense<0xFF800000> : vector<256xf32>
    %54 = vector.multi_reduction <maximumf>, %53, %cst_26 [0] : vector<16x256xf32> to vector<256xf32>
    %55 = vector.shape_cast %54 : vector<256xf32> to vector<1x256xf32>
    %56 = vector.broadcast %55 : vector<1x256xf32> to vector<16x256xf32>
    %57 = arith.subf %53, %56 : vector<16x256xf32>
    %58 = math.exp %57 : vector<16x256xf32>
    %cst_27 = arith.constant dense<0.000000e+00> : vector<256xf32>
    %59 = vector.multi_reduction <add>, %58, %cst_27 [0] : vector<16x256xf32> to vector<256xf32>
    %60 = vector.shape_cast %59 : vector<256xf32> to vector<1x256xf32>
    %61 = tpu.reciprocal %60 {approx = true} : vector<1x256xf32> -> vector<1x256xf32>
    %62 = arith.mulf %60, %61 : vector<1x256xf32>
    %cst_28 = arith.constant 2.000000e+00 : f32
    %63 = vector.broadcast %cst_28 : f32 to vector<1x256xf32>
    %64 = arith.subf %63, %62 : vector<1x256xf32>
    %65 = arith.mulf %61, %64 : vector<1x256xf32>
    %66 = vector.broadcast %65 : vector<1x256xf32> to vector<16x256xf32>
    %67 = arith.mulf %58, %66 : vector<16x256xf32>
    %68 = arith.mulf %58, %57 : vector<16x256xf32>
    %cst_29 = arith.constant dense<0.000000e+00> : vector<256xf32>
    %69 = vector.multi_reduction <add>, %68, %cst_29 [0] : vector<16x256xf32> to vector<256xf32>
    %70 = vector.shape_cast %69 : vector<256xf32> to vector<1x256xf32>
    %71 = arith.mulf %70, %65 : vector<1x256xf32>
    %72 = math.log %60 : vector<1x256xf32>
    %73 = arith.subf %71, %72 : vector<1x256xf32>
    %c0_30 = arith.constant 0 : index
    %c0_31 = arith.constant 0 : index
    %c0_32 = arith.constant 0 : index
    %74 = vector.load %arg5[%c0_30, %c0_31, %c0_32] : memref<1x16x256xf32, #tpu.memory_space<vmem>>, vector<1x16x256xf32>
    %75 = vector.shape_cast %74 : vector<1x16x256xf32> to vector<16x256xf32>
    %cst_33 = arith.constant dense<0xFF800000> : vector<256xf32>
    %76 = vector.multi_reduction <maximumf>, %75, %cst_33 [0] : vector<16x256xf32> to vector<256xf32>
    %77 = vector.shape_cast %76 : vector<256xf32> to vector<1x256xf32>
    %78 = vector.broadcast %77 : vector<1x256xf32> to vector<16x256xf32>
    %79 = arith.subf %75, %78 : vector<16x256xf32>
    %80 = math.exp %79 : vector<16x256xf32>
    %cst_34 = arith.constant dense<0.000000e+00> : vector<256xf32>
    %81 = vector.multi_reduction <add>, %80, %cst_34 [0] : vector<16x256xf32> to vector<256xf32>
    %82 = vector.shape_cast %81 : vector<256xf32> to vector<1x256xf32>
    %83 = math.log %82 : vector<1x256xf32>
    %84 = arith.addf %83, %77 : vector<1x256xf32>
    %85 = arith.mulf %9, %75 : vector<16x256xf32>
    %cst_35 = arith.constant dense<0.000000e+00> : vector<256xf32>
    %86 = vector.multi_reduction <add>, %85, %cst_35 [0] : vector<16x256xf32> to vector<256xf32>
    %87 = vector.shape_cast %86 : vector<256xf32> to vector<1x256xf32>
    %88 = arith.subf %84, %87 : vector<1x256xf32>
    %c0_36 = arith.constant 0 : index
    %c2 = arith.constant 2 : index
    %c0_37 = arith.constant 0 : index
    %89 = vector.load %arg7[%c0_36, %c2, %c0_37] : memref<1x6x256xf32, #tpu.memory_space<vmem>>, vector<1x1x256xf32>
    %90 = vector.shape_cast %89 : vector<1x1x256xf32> to vector<1x256xf32>
    %91 = arith.addf %90, %88 : vector<1x256xf32>
    %c0_38 = arith.constant 0 : index
    %c2_39 = arith.constant 2 : index
    %c0_40 = arith.constant 0 : index
    %92 = vector.load %arg7[%c0_38, %c2_39, %c0_40] : memref<1x6x256xf32, #tpu.memory_space<vmem>>, vector<1x1x256xf32>
    %93 = vector.shape_cast %92 : vector<1x1x256xf32> to vector<1x256xf32>
    %94 = vector.shape_cast %91 : vector<1x256xf32> to vector<1x1x256xf32>
    tpu.vector_store %arg7[%c0_38, %c2_39, %c0_40], %94 {strides = array<i32>} : memref<1x6x256xf32, #tpu.memory_space<vmem>>, vector<1x1x256xf32>,
    %cst_41 = arith.constant 2.500000e-01 : f32
    %95 = vector.broadcast %cst_41 : f32 to vector<16x256xf32>
    %96 = arith.mulf %75, %95 : vector<16x256xf32>
    %cst_42 = arith.constant dense<0xFF800000> : vector<256xf32>
    %97 = vector.multi_reduction <maximumf>, %96, %cst_42 [0] : vector<16x256xf32> to vector<256xf32>
    %98 = vector.shape_cast %97 : vector<256xf32> to vector<1x256xf32>
    %99 = vector.broadcast %98 : vector<1x256xf32> to vector<16x256xf32>
    %100 = arith.subf %96, %99 : vector<16x256xf32>
    %101 = math.exp %100 : vector<16x256xf32>
    %cst_43 = arith.constant dense<0.000000e+00> : vector<256xf32>
    %102 = vector.multi_reduction <add>, %101, %cst_43 [0] : vector<16x256xf32> to vector<256xf32>
    %103 = vector.shape_cast %102 : vector<256xf32> to vector<1x256xf32>
    %104 = math.log %103 : vector<1x256xf32>
    %105 = arith.addf %104, %98 : vector<1x256xf32>
    %106 = arith.mulf %67, %96 : vector<16x256xf32>
    %cst_44 = arith.constant dense<0.000000e+00> : vector<256xf32>
    %107 = vector.multi_reduction <add>, %106, %cst_44 [0] : vector<16x256xf32> to vector<256xf32>
    %108 = vector.shape_cast %107 : vector<256xf32> to vector<1x256xf32>
    %109 = arith.subf %73, %108 : vector<1x256xf32>
    %110 = arith.addf %109, %105 : vector<1x256xf32>
    %c0_45 = arith.constant 0 : index
    %c4 = arith.constant 4 : index
    %c0_46 = arith.constant 0 : index
    %111 = vector.load %arg7[%c0_45, %c4, %c0_46] : memref<1x6x256xf32, #tpu.memory_space<vmem>>, vector<1x1x256xf32>
    %112 = vector.shape_cast %111 : vector<1x1x256xf32> to vector<1x256xf32>
    %113 = arith.addf %112, %110 : vector<1x256xf32>
    %c0_47 = arith.constant 0 : index
    %c4_48 = arith.constant 4 : index
    %c0_49 = arith.constant 0 : index
    %114 = vector.load %arg7[%c0_47, %c4_48, %c0_49] : memref<1x6x256xf32, #tpu.memory_space<vmem>>, vector<1x1x256xf32>
    %115 = vector.shape_cast %114 : vector<1x1x256xf32> to vector<1x256xf32>
    %116 = vector.shape_cast %113 : vector<1x256xf32> to vector<1x1x256xf32>
    tpu.vector_store %arg7[%c0_47, %c4_48, %c0_49], %116 {strides = array<i32>} : memref<1x6x256xf32, #tpu.memory_space<vmem>>, vector<1x1x256xf32>,
    %c0_50 = arith.constant 0 : index
    %c0_51 = arith.constant 0 : index
    %c0_52 = arith.constant 0 : index
    %117 = vector.load %arg6[%c0_50, %c0_51, %c0_52] : memref<1x16x256xf32, #tpu.memory_space<vmem>>, vector<1x16x256xf32>
    %118 = vector.shape_cast %117 : vector<1x16x256xf32> to vector<16x256xf32>
    %cst_53 = arith.constant dense<0xFF800000> : vector<256xf32>
    %119 = vector.multi_reduction <maximumf>, %118, %cst_53 [0] : vector<16x256xf32> to vector<256xf32>
    %120 = vector.shape_cast %119 : vector<256xf32> to vector<1x256xf32>
    %121 = vector.broadcast %120 : vector<1x256xf32> to vector<16x256xf32>
    %122 = arith.subf %118, %121 : vector<16x256xf32>
    %123 = math.exp %122 : vector<16x256xf32>
    %cst_54 = arith.constant dense<0.000000e+00> : vector<256xf32>
    %124 = vector.multi_reduction <add>, %123, %cst_54 [0] : vector<16x256xf32> to vector<256xf32>
    %125 = vector.shape_cast %124 : vector<256xf32> to vector<1x256xf32>
    %126 = math.log %125 : vector<1x256xf32>
    %127 = arith.addf %126, %120 : vector<1x256xf32>
    %128 = arith.mulf %9, %118 : vector<16x256xf32>
    %cst_55 = arith.constant dense<0.000000e+00> : vector<256xf32>
    %129 = vector.multi_reduction <add>, %128, %cst_55 [0] : vector<16x256xf32> to vector<256xf32>
    %130 = vector.shape_cast %129 : vector<256xf32> to vector<1x256xf32>
    %131 = arith.subf %127, %130 : vector<1x256xf32>
    %c0_56 = arith.constant 0 : index
    %c3 = arith.constant 3 : index
    %c0_57 = arith.constant 0 : index
    %132 = vector.load %arg7[%c0_56, %c3, %c0_57] : memref<1x6x256xf32, #tpu.memory_space<vmem>>, vector<1x1x256xf32>
    %133 = vector.shape_cast %132 : vector<1x1x256xf32> to vector<1x256xf32>
    %134 = arith.addf %133, %131 : vector<1x256xf32>
    %c0_58 = arith.constant 0 : index
    %c3_59 = arith.constant 3 : index
    %c0_60 = arith.constant 0 : index
    %135 = vector.load %arg7[%c0_58, %c3_59, %c0_60] : memref<1x6x256xf32, #tpu.memory_space<vmem>>, vector<1x1x256xf32>
    %136 = vector.shape_cast %135 : vector<1x1x256xf32> to vector<1x256xf32>
    %137 = vector.shape_cast %134 : vector<1x256xf32> to vector<1x1x256xf32>
    tpu.vector_store %arg7[%c0_58, %c3_59, %c0_60], %137 {strides = array<i32>} : memref<1x6x256xf32, #tpu.memory_space<vmem>>, vector<1x1x256xf32>,
    %cst_61 = arith.constant 2.500000e-01 : f32
    %138 = vector.broadcast %cst_61 : f32 to vector<16x256xf32>
    %139 = arith.mulf %118, %138 : vector<16x256xf32>
    %cst_62 = arith.constant dense<0xFF800000> : vector<256xf32>
    %140 = vector.multi_reduction <maximumf>, %139, %cst_62 [0] : vector<16x256xf32> to vector<256xf32>
    %141 = vector.shape_cast %140 : vector<256xf32> to vector<1x256xf32>
    %142 = vector.broadcast %141 : vector<1x256xf32> to vector<16x256xf32>
    %143 = arith.subf %139, %142 : vector<16x256xf32>
    %144 = math.exp %143 : vector<16x256xf32>
    %cst_63 = arith.constant dense<0.000000e+00> : vector<256xf32>
    %145 = vector.multi_reduction <add>, %144, %cst_63 [0] : vector<16x256xf32> to vector<256xf32>
    %146 = vector.shape_cast %145 : vector<256xf32> to vector<1x256xf32>
    %147 = math.log %146 : vector<1x256xf32>
    %148 = arith.addf %147, %141 : vector<1x256xf32>
    %149 = arith.mulf %67, %139 : vector<16x256xf32>
    %cst_64 = arith.constant dense<0.000000e+00> : vector<256xf32>
    %150 = vector.multi_reduction <add>, %149, %cst_64 [0] : vector<16x256xf32> to vector<256xf32>
    %151 = vector.shape_cast %150 : vector<256xf32> to vector<1x256xf32>
    %152 = arith.subf %73, %151 : vector<1x256xf32>
    %153 = arith.addf %152, %148 : vector<1x256xf32>
    %c0_65 = arith.constant 0 : index
    %c5 = arith.constant 5 : index
    %c0_66 = arith.constant 0 : index
    %154 = vector.load %arg7[%c0_65, %c5, %c0_66] : memref<1x6x256xf32, #tpu.memory_space<vmem>>, vector<1x1x256xf32>
    %155 = vector.shape_cast %154 : vector<1x1x256xf32> to vector<1x256xf32>
    %156 = arith.addf %155, %153 : vector<1x256xf32>
    %c0_67 = arith.constant 0 : index
    %c5_68 = arith.constant 5 : index
    %c0_69 = arith.constant 0 : index
    %157 = vector.load %arg7[%c0_67, %c5_68, %c0_69] : memref<1x6x256xf32, #tpu.memory_space<vmem>>, vector<1x1x256xf32>
    %158 = vector.shape_cast %157 : vector<1x1x256xf32> to vector<1x256xf32>
    %159 = vector.shape_cast %156 : vector<1x256xf32> to vector<1x1x256xf32>
    tpu.vector_store %arg7[%c0_67, %c5_68, %c0_69], %159 {strides = array<i32>} : memref<1x6x256xf32, #tpu.memory_space<vmem>>, vector<1x1x256xf32>,
    return
  }
  func.func @transform_0(%arg0: i32, %arg1: i32) -> (i32, i32, i32) {
    %c0_i32 = arith.constant 0 : i32
    %c0_i32_0 = arith.constant 0 : i32
    return %arg0, %c0_i32, %arg1 : i32, i32, i32
  }
  func.func @transform_1(%arg0: i32, %arg1: i32) -> (i32, i32, i32) {
    %c0_i32 = arith.constant 0 : i32
    %c0_i32_0 = arith.constant 0 : i32
    return %arg0, %c0_i32, %arg1 : i32, i32, i32
  }
  func.func @transform_2(%arg0: i32, %arg1: i32) -> (i32, i32, i32) {
    %c0_i32 = arith.constant 0 : i32
    %c0_i32_0 = arith.constant 0 : i32
    return %arg0, %c0_i32, %arg1 : i32, i32, i32
  }
  func.func @transform_3(%arg0: i32, %arg1: i32) -> (i32, i32, i32) {
    %c0_i32 = arith.constant 0 : i32
    %c0_i32_0 = arith.constant 0 : i32
    return %arg0, %c0_i32, %arg1 : i32, i32, i32
  }
  func.func @transform_4(%arg0: i32, %arg1: i32) -> (i32, i32, i32) {
    %c0_i32 = arith.constant 0 : i32
    %c0_i32_0 = arith.constant 0 : i32
    return %arg0, %c0_i32, %arg1 : i32, i32, i32
  }
  func.func @transform_5(%arg0: i32, %arg1: i32) -> (i32, i32, i32) {
    %c0_i32 = arith.constant 0 : i32
    %c0_i32_0 = arith.constant 0 : i32
    %c0_i32_1 = arith.constant 0 : i32
    return %arg0, %c0_i32, %c0_i32_0 : i32, i32, i32
  }
}

</mosaic_0001>

<llo_original>
// kernel: _fused_losses.1
$region0: #{_fused_losses.1}
  #allocation0 [shape = 'u32[]', space=smem, size = 0x4, offset = 0x4, fixed_abs, tag = 'smem constant byte address 0x4 - core index']
  #allocation1 [shape = 'u32[144,128]{1,0:T(1,128)}', space=vmem, size = 0x12000, scoped, tag = 'internal scratch']
  %s0 = inlined_call_operand.vmem [shape: s32[2,1,256], index: 0, kind: input, shape index: {}]
  %s1 = inlined_call_operand.vmem [shape: f32[2,16,256], index: 1, kind: input, shape index: {}]
  %s2 = inlined_call_operand.vmem [shape: f32[2,16,256], index: 2, kind: input, shape index: {}]
  %s3 = inlined_call_operand.vmem [shape: f32[2,16,256], index: 3, kind: input, shape index: {}]
  %s4 = inlined_call_operand.vmem [shape: f32[2,16,256], index: 4, kind: input, shape index: {}]
  %s5 = inlined_call_operand.vmem [shape: f32[2,6,256], index: 5, kind: output, shape index: {}]
  %s6 = sld [smem:[#allocation0]]
  $region57: #{_fused_losses.1} parent=0
    _
  %s8 = ssub.s32 1, %s6
  %s9 = scalar_select 0, %s8, %s6
  loop: start=0, step=1, limit=4
  $region2: #{_fused_losses.1} parent=0 // loop_pre_header
    _
  $region3: #{_fused_losses.1} parent=0 // loop_header
    %s11 = sphi 0, %s15
    %p12 = scmp.ge.s32.totalorder %s11, 4
    %s18 = sphi 0, %s30
    %s19 = sphi 0, %s26
    %s20 = sphi 0, %s18
    %s21 = sphi 0, %s19
    %s22 = sphi 0, %s20
    %s23 = sphi 0, %s21
    %s35 = sphi 0, %s37
    %s38 = sphi 0, %s35
    %s39 = sphi 0, %s38
    %s55 = sphi 0, %s39
    %s63 = sphi 0, %s65
    %s66 = sphi 0, %s63
    %s67 = sphi 0, %s66
    %s83 = sphi 0, %s67
    %s91 = sphi 0, %s93
    %s94 = sphi 0, %s91
    %s95 = sphi 0, %s94
    %s111 = sphi 0, %s95
    %s119 = sphi 0, %s121
    %s122 = sphi 0, %s119
    %s123 = sphi 0, %s122
    %s139 = sphi 0, %s123
    %s147 = sphi 0, %s149
    %s150 = sphi 0, %s147
    %s151 = sphi 0, %s150
    %s167 = sphi 0, %s151
    %s173 = sphi 0, %s175
    %s176 = sphi 0, %s173
    %s177 = sphi 0, %s176
    %s193 = sphi 0, %s177
  $region4: #{_fused_losses.1} parent=0 // loop_header_branch
    %14 = sbr.rel (%p12) target = $region8
  $region5: #{_fused_losses.1} parent=0 // loop_body
    %s16 = ssub.s32 %s11, 1
    %s17 = ssub.s32 %s11, 2
    %s24 = sadd.s32 1, %s19
    %p25 = scmp.ge.s32.totalorder %s24, 1
    %s26 = scalar_select %p25, 0, %s24
    %s27 = sadd.s32 1, %s18
    %s28 = scalar_select %p25, %s27, %s18
    %p29 = scmp.ge.s32.totalorder %s28, 2
    %s30 = scalar_select %p29, 0, %s28
    %s31 = ssub.s32 %s18, %s30
    %s32 = ssub.s32 %s19, %s26
    %s33 = sor.u32 %s31, %s32
    %p34 = scmp.eq.s32.totalorder %s33, 0
    %s36 = sadd.s32 %s35, 1
    %s37 = scalar_select %p34, %s35, %s36
    %p40 = pneg %p34
    %p41 = scmp.eq.s32.totalorder %s11, 1
    %p42 = por %p40, %p41
    %p43 = scmp.ne.s32.totalorder %s35, %s38
    %p44 = scmp.eq.s32.totalorder %s11, 0
    %p45 = por %p43, %p44
    %p46 = scmp.ne.s32.totalorder %s35, %s38
    %p47 = scmp.eq.s32.totalorder %s16, 1
    %p48 = por %p46, %p47
    %p49 = scmp.ne.s32.totalorder %s38, %s39
    %p50 = scmp.eq.s32.totalorder %s16, 0
    %p51 = por %p49, %p50
    %p52 = scmp.ne.s32.totalorder %s38, %s39
    %p53 = scmp.eq.s32.totalorder %s17, 1
    %p54 = por %p52, %p53
    %p56 = scmp.ne.s32.totalorder %s39, %s55
    %p57 = scmp.eq.s32.totalorder %s17, 0
    %p58 = por %p56, %p57
    %s59 = ssub.s32 %s18, %s30
    %s60 = ssub.s32 %s19, %s26
    %s61 = sor.u32 %s59, %s60
    %p62 = scmp.eq.s32.totalorder %s61, 0
    %s64 = sadd.s32 %s63, 1
    %s65 = scalar_select %p62, %s63, %s64
    %p68 = pneg %p62
    %p69 = scmp.eq.s32.totalorder %s11, 1
    %p70 = por %p68, %p69
    %p71 = scmp.ne.s32.totalorder %s63, %s66
    %p72 = scmp.eq.s32.totalorder %s11, 0
    %p73 = por %p71, %p72
    %p74 = scmp.ne.s32.totalorder %s63, %s66
    %p75 = scmp.eq.s32.totalorder %s16, 1
    %p76 = por %p74, %p75
    %p77 = scmp.ne.s32.totalorder %s66, %s67
    %p78 = scmp.eq.s32.totalorder %s16, 0
    %p79 = por %p77, %p78
    %p80 = scmp.ne.s32.totalorder %s66, %s67
    %p81 = scmp.eq.s32.totalorder %s17, 1
    %p82 = por %p80, %p81
    %p84 = scmp.ne.s32.totalorder %s67, %s83
    %p85 = scmp.eq.s32.totalorder %s17, 0
    %p86 = por %p84, %p85
    %s87 = ssub.s32 %s18, %s30
    %s88 = ssub.s32 %s19, %s26
    %s89 = sor.u32 %s87, %s88
    %p90 = scmp.eq.s32.totalorder %s89, 0
    %s92 = sadd.s32 %s91, 1
    %s93 = scalar_select %p90, %s91, %s92
    %p96 = pneg %p90
    %p97 = scmp.eq.s32.totalorder %s11, 1
    %p98 = por %p96, %p97
    %p99 = scmp.ne.s32.totalorder %s91, %s94
    %p100 = scmp.eq.s32.totalorder %s11, 0
    %p101 = por %p99, %p100
    %p102 = scmp.ne.s32.totalorder %s91, %s94
    %p103 = scmp.eq.s32.totalorder %s16, 1
    %p104 = por %p102, %p103
    %p105 = scmp.ne.s32.totalorder %s94, %s95
    %p106 = scmp.eq.s32.totalorder %s16, 0
    %p107 = por %p105, %p106
    %p108 = scmp.ne.s32.totalorder %s94, %s95
    %p109 = scmp.eq.s32.totalorder %s17, 1
    %p110 = por %p108, %p109
    %p112 = scmp.ne.s32.totalorder %s95, %s111
    %p113 = scmp.eq.s32.totalorder %s17, 0
    %p114 = por %p112, %p113
    %s115 = ssub.s32 %s18, %s30
    %s116 = ssub.s32 %s19, %s26
    %s117 = sor.u32 %s115, %s116
    %p118 = scmp.eq.s32.totalorder %s117, 0
    %s120 = sadd.s32 %s119, 1
    %s121 = scalar_select %p118, %s119, %s120
    %p124 = pneg %p118
    %p125 = scmp.eq.s32.totalorder %s11, 1
    %p126 = por %p124, %p125
    %p127 = scmp.ne.s32.totalorder %s119, %s122
    %p128 = scmp.eq.s32.totalorder %s11, 0
    %p129 = por %p127, %p128
    %p130 = scmp.ne.s32.totalorder %s119, %s122
    %p131 = scmp.eq.s32.totalorder %s16, 1
    %p132 = por %p130, %p131
    %p133 = scmp.ne.s32.totalorder %s122, %s123
    %p134 = scmp.eq.s32.totalorder %s16, 0
    %p135 = por %p133, %p134
    %p136 = scmp.ne.s32.totalorder %s122, %s123
    %p137 = scmp.eq.s32.totalorder %s17, 1
    %p138 = por %p136, %p137
    %p140 = scmp.ne.s32.totalorder %s123, %s139
    %p141 = scmp.eq.s32.totalorder %s17, 0
    %p142 = por %p140, %p141
    %s143 = ssub.s32 %s18, %s30
    %s144 = ssub.s32 %s19, %s26
    %s145 = sor.u32 %s143, %s144
    %p146 = scmp.eq.s32.totalorder %s145, 0
    %s148 = sadd.s32 %s147, 1
    %s149 = scalar_select %p146, %s147, %s148
    %p152 = pneg %p146
    %p153 = scmp.eq.s32.totalorder %s11, 1
    %p154 = por %p152, %p153
    %p155 = scmp.ne.s32.totalorder %s147, %s150
    %p156 = scmp.eq.s32.totalorder %s11, 0
    %p157 = por %p155, %p156
    %p158 = scmp.ne.s32.totalorder %s147, %s150
    %p159 = scmp.eq.s32.totalorder %s16, 1
    %p160 = por %p158, %p159
    %p161 = scmp.ne.s32.totalorder %s150, %s151
    %p162 = scmp.eq.s32.totalorder %s16, 0
    %p163 = por %p161, %p162
    %p164 = scmp.ne.s32.totalorder %s150, %s151
    %p165 = scmp.eq.s32.totalorder %s17, 1
    %p166 = por %p164, %p165
    %p168 = scmp.ne.s32.totalorder %s151, %s167
    %p169 = scmp.eq.s32.totalorder %s17, 0
    %p170 = por %p168, %p169
    %s171 = ssub.s32 %s18, %s30
    %p172 = scmp.eq.s32.totalorder %s171, 0
    %s174 = sadd.s32 %s173, 1
    %s175 = scalar_select %p172, %s173, %s174
    %p178 = pneg %p172
    %p179 = scmp.eq.s32.totalorder %s11, 1
    %p180 = por %p178, %p179
    %p181 = scmp.ne.s32.totalorder %s173, %s176
    %p182 = scmp.eq.s32.totalorder %s11, 0
    %p183 = por %p181, %p182
    %p184 = scmp.ne.s32.totalorder %s173, %s176
    %p185 = scmp.eq.s32.totalorder %s16, 1
    %p186 = por %p184, %p185
    %p187 = scmp.ne.s32.totalorder %s176, %s177
    %p188 = scmp.eq.s32.totalorder %s16, 0
    %p189 = por %p187, %p188
    %p190 = scmp.ne.s32.totalorder %s176, %s177
    %p191 = scmp.eq.s32.totalorder %s17, 1
    %p192 = por %p190, %p191
    %p194 = scmp.ne.s32.totalorder %s177, %s193
    %p195 = scmp.eq.s32.totalorder %s17, 0
    %p196 = por %p194, %p195
    %p197 = scmp.le.s32.totalorder 1, %s11
    %p198 = scmp.lt.s32.totalorder %s11, 3
    %p199 = pnand %p197, %p198
    %p200 = pneg %p199
    // Predicated region
    $region9: #{_fused_losses.1} parent=5 // pred_check
      _
    $region10: #{_fused_losses.1} parent=5 // pred_check_branch
      %202 = sbr.rel (%p199) target = $region12
    $region11: #{_fused_losses.1} parent=5 // pred_region
      %s203 = ssub.s32 %s11, 1
    $region12: #{_fused_losses.1} parent=5 // pred_fallthru
      _
    %p204 = scmp.lt.s32.totalorder %s11, 2
    // Predicated region
    $region13: #{_fused_losses.1} parent=5 // pred_check
      %p205 = pneg %p204
    $region14: #{_fused_losses.1} parent=5 // pred_check_branch
      %207 = sbr.rel (%p205) target = $region16
    $region15: #{_fused_losses.1} parent=5 // pred_region
      // Predicated region
      $region17: #{_fused_losses.1} parent=15 // pred_check
        %p208 = pneg %p45
      $region18: #{_fused_losses.1} parent=15 // pred_check_branch
        %210 = sbr.rel (%p208) target = $region20
      $region19: #{_fused_losses.1} parent=15 // pred_region
        %s211 = smul.u32 2, %s19
        %p212 = scmp.lt.s32.totalorder %s18, 1
        %s213 = scalar_select %p212, %s18, 1
        %p214 = scmp.lt.s32.totalorder %s211, 1
        %s215 = scalar_select %p214, %s211, 1
        %s216 = smul.addr %s213, 2
        %s217 = sadd.s32 %s215, %s216
        %s218 = scalar_lea.vmem %s0, %s217
        %s219 = smul.u32 2, %s19
      $region20: #{_fused_losses.1} parent=15 // pred_fallthru
        _
      // Predicated region
      $region21: #{_fused_losses.1} parent=15 // pred_check
        %p220 = pneg %p73
      $region22: #{_fused_losses.1} parent=15 // pred_check_branch
        %222 = sbr.rel (%p220) target = $region24
      $region23: #{_fused_losses.1} parent=15 // pred_region
        %s223 = smul.u32 2, %s19
        %p224 = scmp.lt.s32.totalorder %s18, 1
        %s225 = scalar_select %p224, %s18, 1
        %p226 = scmp.lt.s32.totalorder %s223, 1
        %s227 = scalar_select %p226, %s223, 1
        %s228 = smul.addr %s225, 4
        %s229 = sadd.s32 %s227, %s228
        %s230 = smul.addr %s229, 8
        %s231 = scalar_lea.vmem %s1, %s230
        %s232 = smul.u32 2, %s19
      $region24: #{_fused_losses.1} parent=15 // pred_fallthru
        _
      // Predicated region
      $region25: #{_fused_losses.1} parent=15 // pred_check
        %p233 = pneg %p101
      $region26: #{_fused_losses.1} parent=15 // pred_check_branch
        %235 = sbr.rel (%p233) target = $region28
      $region27: #{_fused_losses.1} parent=15 // pred_region
        %s236 = smul.u32 2, %s19
        %p237 = scmp.lt.s32.totalorder %s18, 1
        %s238 = scalar_select %p237, %s18, 1
        %p239 = scmp.lt.s32.totalorder %s236, 1
        %s240 = scalar_select %p239, %s236, 1
        %s241 = smul.addr %s238, 4
        %s242 = sadd.s32 %s240, %s241
        %s243 = smul.addr %s242, 8
        %s244 = scalar_lea.vmem %s2, %s243
        %s245 = smul.u32 2, %s19
      $region28: #{_fused_losses.1} parent=15 // pred_fallthru
        _
      // Predicated region
      $region29: #{_fused_losses.1} parent=15 // pred_check
        %p246 = pneg %p129
      $region30: #{_fused_losses.1} parent=15 // pred_check_branch
        %248 = sbr.rel (%p246) target = $region32
      $region31: #{_fused_losses.1} parent=15 // pred_region
        %s249 = smul.u32 2, %s19
        %p250 = scmp.lt.s32.totalorder %s18, 1
        %s251 = scalar_select %p250, %s18, 1
        %p252 = scmp.lt.s32.totalorder %s249, 1
        %s253 = scalar_select %p252, %s249, 1
        %s254 = smul.addr %s251, 4
        %s255 = sadd.s32 %s253, %s254
        %s256 = smul.addr %s255, 8
        %s257 = scalar_lea.vmem %s3, %s256
        %s258 = smul.u32 2, %s19
      $region32: #{_fused_losses.1} parent=15 // pred_fallthru
        _
      // Predicated region
      $region33: #{_fused_losses.1} parent=15 // pred_check
        %p259 = pneg %p157
      $region34: #{_fused_losses.1} parent=15 // pred_check_branch
        %261 = sbr.rel (%p259) target = $region36
      $region35: #{_fused_losses.1} parent=15 // pred_region
        %s262 = smul.u32 2, %s19
        %p263 = scmp.lt.s32.totalorder %s18, 1
        %s264 = scalar_select %p263, %s18, 1
        %p265 = scmp.lt.s32.totalorder %s262, 1
        %s266 = scalar_select %p265, %s262, 1
        %s267 = smul.addr %s264, 4
        %s268 = sadd.s32 %s266, %s267
        %s269 = smul.addr %s268, 8
        %s270 = scalar_lea.vmem %s4, %s269
        %s271 = smul.u32 2, %s19
      $region36: #{_fused_losses.1} parent=15 // pred_fallthru
        _
    $region16: #{_fused_losses.1} parent=5 // pred_fallthru
      _
    %p272 = scmp.le.s32.totalorder 1, %s11
    %p273 = scmp.lt.s32.totalorder %s11, 3
    %p274 = pnand %p272, %p273
    %p275 = pneg %p274
    // Predicated region
    $region37: #{_fused_losses.1} parent=5 // pred_check
      _
    $region38: #{_fused_losses.1} parent=5 // pred_check_branch
      %277 = sbr.rel (%p274) target = $region40
    $region39: #{_fused_losses.1} parent=5 // pred_region
      %s278 = ssub.s32 %s11, 1
      %s279 = smul.u32 2, %s21
      %p280 = scmp.lt.s32.totalorder %s20, 1
      %s281 = scalar_select %p280, %s20, 1
      %p282 = scmp.lt.s32.totalorder %s279, 1
      %s283 = scalar_select %p282, %s279, 1
      %s284 = smul.addr %s281, 2
      %s285 = sadd.s32 %s283, %s284
      %s286 = scalar_lea.vmem %s0, %s285
      %p287 = pneg %p51
      %p288 = pneg %p48
      %s289 = smul.u32 2, %s21
      %p290 = scmp.lt.s32.totalorder %s20, 1
      %s291 = scalar_select %p290, %s20, 1
      %p292 = scmp.lt.s32.totalorder %s289, 1
      %s293 = scalar_select %p292, %s289, 1
      %s294 = smul.addr %s291, 4
      %s295 = sadd.s32 %s293, %s294
      %s296 = smul.addr %s295, 8
      %s297 = scalar_lea.vmem %s1, %s296
      %p298 = pneg %p79
      %p299 = pneg %p76
      %s300 = smul.u32 2, %s21
      %p301 = scmp.lt.s32.totalorder %s20, 1
      %s302 = scalar_select %p301, %s20, 1
      %p303 = scmp.lt.s32.totalorder %s300, 1
      %s304 = scalar_select %p303, %s300, 1
      %s305 = smul.addr %s302, 4
      %s306 = sadd.s32 %s304, %s305
      %s307 = smul.addr %s306, 8
      %s308 = scalar_lea.vmem %s2, %s307
      %p309 = pneg %p107
      %p310 = pneg %p104
      %s311 = smul.u32 2, %s21
      %p312 = scmp.lt.s32.totalorder %s20, 1
      %s313 = scalar_select %p312, %s20, 1
      %p314 = scmp.lt.s32.totalorder %s311, 1
      %s315 = scalar_select %p314, %s311, 1
      %s316 = smul.addr %s313, 4
      %s317 = sadd.s32 %s315, %s316
      %s318 = smul.addr %s317, 8
      %s319 = scalar_lea.vmem %s3, %s318
      %p320 = pneg %p135
      %p321 = pneg %p132
      %s322 = smul.u32 2, %s21
      %p323 = scmp.lt.s32.totalorder %s20, 1
      %s324 = scalar_select %p323, %s20, 1
      %p325 = scmp.lt.s32.totalorder %s322, 1
      %s326 = scalar_select %p325, %s322, 1
      %s327 = smul.addr %s324, 4
      %s328 = sadd.s32 %s326, %s327
      %s329 = smul.addr %s328, 8
      %s330 = scalar_lea.vmem %s4, %s329
      %p331 = pneg %p163
      %p332 = pneg %p160
      %p333 = pneg %p189
      %p334 = pneg %p186
      %p335 = scmp.lt.s32.totalorder %s20, 1
      %s336 = scalar_select %p335, %s20, 1
      %s337 = smul.addr %s336, 2
      %s338 = smul.addr %s337, 8
      %s339 = scalar_lea.vmem %s5, %s338
      %s340 = smul.u32 2, %s21
      %p341 = scmp.lt.s32.totalorder %s20, 1
      %s342 = scalar_select %p341, %s20, 1
      %p343 = scmp.lt.s32.totalorder %s340, 1
      %s344 = scalar_select %p343, %s340, 1
      %s345 = smul.addr %s342, 2
      %s346 = sadd.s32 %s344, %s345
      %s347 = scalar_lea.vmem %s0, %s346
      %s348 = smul.u32 2, %s21
      %s349 = smul.u32 2, %s21
      %p350 = scmp.lt.s32.totalorder %s20, 1
      %s351 = scalar_select %p350, %s20, 1
      %p352 = scmp.lt.s32.totalorder %s349, 1
      %s353 = scalar_select %p352, %s349, 1
      %s354 = smul.addr %s351, 4
      %s355 = sadd.s32 %s353, %s354
      %s356 = smul.addr %s355, 8
      %s357 = scalar_lea.vmem %s1, %s356
      %s358 = smul.u32 2, %s21
      %s359 = smul.u32 2, %s21
      %p360 = scmp.lt.s32.totalorder %s20, 1
      %s361 = scalar_select %p360, %s20, 1
      %p362 = scmp.lt.s32.totalorder %s359, 1
      %s363 = scalar_select %p362, %s359, 1
      %s364 = smul.addr %s361, 4
      %s365 = sadd.s32 %s363, %s364
      %s366 = smul.addr %s365, 8
      %s367 = scalar_lea.vmem %s2, %s366
      %s368 = smul.u32 2, %s21
      %s369 = smul.u32 2, %s21
      %p370 = scmp.lt.s32.totalorder %s20, 1
      %s371 = scalar_select %p370, %s20, 1
      %p372 = scmp.lt.s32.totalorder %s369, 1
      %s373 = scalar_select %p372, %s369, 1
      %s374 = smul.addr %s371, 4
      %s375 = sadd.s32 %s373, %s374
      %s376 = smul.addr %s375, 8
      %s377 = scalar_lea.vmem %s3, %s376
      %s378 = smul.u32 2, %s21
      %s379 = smul.u32 2, %s21
      %p380 = scmp.lt.s32.totalorder %s20, 1
      %s381 = scalar_select %p380, %s20, 1
      %p382 = scmp.lt.s32.totalorder %s379, 1
      %s383 = scalar_select %p382, %s379, 1
      %s384 = smul.addr %s381, 4
      %s385 = sadd.s32 %s383, %s384
      %s386 = smul.addr %s385, 8
      %s387 = scalar_lea.vmem %s4, %s386
      %s388 = smul.u32 2, %s21
      %p389 = scmp.lt.s32.totalorder %s20, 1
      %s390 = scalar_select %p389, %s20, 1
      %s391 = smul.addr %s390, 2
      %s392 = smul.addr %s391, 8
      %s393 = scalar_lea.vmem %s5, %s392
      %p394 = scmp.eq.s32.totalorder %s21, 0
      // Predicated region
      $region41: #{_fused_losses.1} parent=39 // pred_check
        %p395 = pneg %p394
      $region42: #{_fused_losses.1} parent=39 // pred_check_branch
        %397 = sbr.rel (%p395) target = $region44
      $region43: #{_fused_losses.1} parent=39 // pred_region
        %398 = vst [vmem:[%s393] sm:$0x3f] 0.0
        %399 = vst [vmem:[%s393 + $0x8] sm:$0x3f] 0.0
      $region44: #{_fused_losses.1} parent=39 // pred_fallthru
        _
      %v400 = vld [vmem:[%s347] sm:$0x3]
      %v401 = vlaneseq
      %v402 = vshrl.u32 %v401, 7
      %v403 = vadd.s32 %v402, 8
      %v404 = vlaneseq
      %v405 = vshrl.u32 %v404, 7
      %v406 = vsub.s32 0, %v405
      %v407 = vrot.slane %v400, %v406
      %v408 = vlaneseq
      %v409 = vshrl.u32 %v408, 7
      %v410 = vsub.s32 1, %v409
      %v411 = vrot.slane %v400, %v410
      %vm412 = vcmp.eq.s32.totalorder %v402, %v407
      %vm413 = vcmp.eq.s32.totalorder %v402, %v411
      %vm414 = vcmp.eq.s32.totalorder %v403, %v407
      %vm415 = vcmp.eq.s32.totalorder %v403, %v411
      %v416 = vsel %vm412, 1, 0
      %v417 = vsel %vm413, 1, 0
      %v418 = vsel %vm414, 1, 0
      %v419 = vsel %vm415, 1, 0
      %v420 = vcvt.s32.f32 %v416
      %v421 = vcvt.s32.f32 %v417
      %v422 = vcvt.s32.f32 %v418
      %v423 = vcvt.s32.f32 %v419
      %v424 = vld [vmem:[%s357] sm:$0xff]
      %v425 = vld [vmem:[%s357 + $0x8] sm:$0xff]
      %v426 = vld [vmem:[%s357 + $0x10] sm:$0xff]
      %v427 = vld [vmem:[%s357 + $0x18] sm:$0xff]
      %v428 = vmax.f32 %v424, %v426
      %v429 = vrot.slane %v428, 4
      %v430 = vmax.f32 %v428, %v429
      %v431 = vrot.slane %v430, 2
      %v432 = vmax.f32 %v430, %v431
      %v433 = vrot.slane %v432, 1
      %v434 = vmax.f32 %v432, %v433
      %v435 = vmax.f32 %v425, %v427
      %v436 = vrot.slane %v435, 4
      %v437 = vmax.f32 %v435, %v436
      %v438 = vrot.slane %v437, 2
      %v439 = vmax.f32 %v437, %v438
      %v440 = vrot.slane %v439, 1
      %v441 = vmax.f32 %v439, %v440
      %v442 = vsub.f32 %v424, %v434
      %v443 = vsub.f32 %v425, %v441
      %v444 = vsub.f32 %v426, %v434
      %v445 = vsub.f32 %v427, %v441
      %v446 = vmul.f32 %v442, 1.442695
      %v447 = vpow.pop %v446
      %v448 = vmul.f32 %v443, 1.442695
      %v449 = vpow.pop %v448
      %v450 = vmul.f32 %v444, 1.442695
      %v451 = vpow.pop %v450
      %v452 = vmul.f32 %v445, 1.442695
      %v453 = vpow.pop %v452
      %v454 = vadd.f32 %v447, %v451
      %v455 = vrot.slane %v454, 4
      %v456 = vadd.f32 %v454, %v455
      %v457 = vrot.slane %v456, 2
      %v458 = vadd.f32 %v456, %v457
      %v459 = vrot.slane %v458, 1
      %v460 = vadd.f32 %v458, %v459
      %v461 = vadd.f32 %v449, %v453
      %v462 = vrot.slane %v461, 4
      %v463 = vadd.f32 %v461, %v462
      %v464 = vrot.slane %v463, 2
      %v465 = vadd.f32 %v463, %v464
      %v466 = vrot.slane %v465, 1
      %v467 = vadd.f32 %v465, %v466
      %v468 = vlog2.pop %v460
      %v469 = vmul.f32 %v468, 0.6931472
      %v470 = vlog2.pop %v467
      %v471 = vmul.f32 %v470, 0.6931472
      %v472 = vadd.f32 %v469, %v434
      %v473 = vadd.f32 %v471, %v441
      %v474 = vmul.f32 %v420, %v424
      %v475 = vmul.f32 %v421, %v425
      %v476 = vmul.f32 %v422, %v426
      %v477 = vmul.f32 %v423, %v427
      %v478 = vadd.f32 %v474, %v476
      %v479 = vrot.slane %v478, 4
      %v480 = vadd.f32 %v478, %v479
      %v481 = vrot.slane %v480, 2
      %v482 = vadd.f32 %v480, %v481
      %v483 = vrot.slane %v482, 1
      %v484 = vadd.f32 %v482, %v483
      %v485 = vadd.f32 %v475, %v477
      %v486 = vrot.slane %v485, 4
      %v487 = vadd.f32 %v485, %v486
      %v488 = vrot.slane %v487, 2
      %v489 = vadd.f32 %v487, %v488
      %v490 = vrot.slane %v489, 1
      %v491 = vadd.f32 %v489, %v490
      %v492 = vsub.f32 %v472, %v484
      %v493 = vsub.f32 %v473, %v491
      %v494 = vld [vmem:[%s393] ss:$8 sm:$0x3]
      %v497 = vcombine.low %v492, %v493
      %v499 = vunpack.c.l.s4 1966171168
      %v500 = vunpack.c.0.s8 %v499
      %v501 = vlaneseq
      %v502 = vshrl.u32 %v501, 7
      %v503 = vsub.s32 %v500, %v502
      %v504 = vrot.slane %v497, %v503
      %v506 = vunpack.c.l.s4 1966171168
      %v507 = vunpack.c.0.s8 %v506
      %v508 = vlaneseq
      %v509 = vshrl.u32 %v508, 7
      %v510 = vsub.s32 %v507, %v509
      %v511 = vrot.slane %v504, %v510
      %v513 = vadd.f32 %v494, %v511
      %v514 = vlaneseq
      %vm515 = vcmp.ge.s32.totalorder %v514, 0
      %vm516 = vcmp.lt.s32.totalorder %v514, 256
      %vm517 = vmand %vm515, %vm516
      %518 = vst.msk [vmem:[%s393] ss:$8 sm:$0x3] %vm517, %v513
      %519 = vst.msk [vmem:[%s393] ss:$8 sm:$0x0] %vm517, %v513
      %v520 = vld [vmem:[%s367] sm:$0xff]
      %v521 = vld [vmem:[%s367 + $0x8] sm:$0xff]
      %v522 = vld [vmem:[%s367 + $0x10] sm:$0xff]
      %v523 = vld [vmem:[%s367 + $0x18] sm:$0xff]
      %v524 = vmax.f32 %v520, %v522
      %v525 = vrot.slane %v524, 4
      %v526 = vmax.f32 %v524, %v525
      %v527 = vrot.slane %v526, 2
      %v528 = vmax.f32 %v526, %v527
      %v529 = vrot.slane %v528, 1
      %v530 = vmax.f32 %v528, %v529
      %v531 = vmax.f32 %v521, %v523
      %v532 = vrot.slane %v531, 4
      %v533 = vmax.f32 %v531, %v532
      %v534 = vrot.slane %v533, 2
      %v535 = vmax.f32 %v533, %v534
      %v536 = vrot.slane %v535, 1
      %v537 = vmax.f32 %v535, %v536
      %v538 = vsub.f32 %v520, %v530
      %v539 = vsub.f32 %v521, %v537
      %v540 = vsub.f32 %v522, %v530
      %v541 = vsub.f32 %v523, %v537
      %v542 = vmul.f32 %v538, 1.442695
      %v543 = vpow.pop %v542
      %v544 = vmul.f32 %v539, 1.442695
      %v545 = vpow.pop %v544
      %v546 = vmul.f32 %v540, 1.442695
      %v547 = vpow.pop %v546
      %v548 = vmul.f32 %v541, 1.442695
      %v549 = vpow.pop %v548
      %v550 = vadd.f32 %v543, %v547
      %v551 = vrot.slane %v550, 4
      %v552 = vadd.f32 %v550, %v551
      %v553 = vrot.slane %v552, 2
      %v554 = vadd.f32 %v552, %v553
      %v555 = vrot.slane %v554, 1
      %v556 = vadd.f32 %v554, %v555
      %v557 = vadd.f32 %v545, %v549
      %v558 = vrot.slane %v557, 4
      %v559 = vadd.f32 %v557, %v558
      %v560 = vrot.slane %v559, 2
      %v561 = vadd.f32 %v559, %v560
      %v562 = vrot.slane %v561, 1
      %v563 = vadd.f32 %v561, %v562
      %v564 = vlog2.pop %v556
      %v565 = vmul.f32 %v564, 0.6931472
      %v566 = vlog2.pop %v563
      %v567 = vmul.f32 %v566, 0.6931472
      %v568 = vadd.f32 %v565, %v530
      %v569 = vadd.f32 %v567, %v537
      %v570 = vmul.f32 %v420, %v520
      %v571 = vmul.f32 %v421, %v521
      %v572 = vmul.f32 %v422, %v522
      %v573 = vmul.f32 %v423, %v523
      %v574 = vadd.f32 %v570, %v572
      %v575 = vrot.slane %v574, 4
      %v576 = vadd.f32 %v574, %v575
      %v577 = vrot.slane %v576, 2
      %v578 = vadd.f32 %v576, %v577
      %v579 = vrot.slane %v578, 1
      %v580 = vadd.f32 %v578, %v579
      %v581 = vadd.f32 %v571, %v573
      %v582 = vrot.slane %v581, 4
      %v583 = vadd.f32 %v581, %v582
      %v584 = vrot.slane %v583, 2
      %v585 = vadd.f32 %v583, %v584
      %v586 = vrot.slane %v585, 1
      %v587 = vadd.f32 %v585, %v586
      %v588 = vsub.f32 %v568, %v580
      %v589 = vsub.f32 %v569, %v587
      %s590 = scalar_lea.vmem %s393, 1
      %v591 = vld [vmem:[%s590] ss:$8 sm:$0x3]
      %v594 = vcombine.low %v588, %v589
      %v596 = vunpack.c.l.s4 1966171168
      %v597 = vunpack.c.0.s8 %v596
      %v598 = vlaneseq
      %v599 = vshrl.u32 %v598, 7
      %v600 = vsub.s32 %v597, %v599
      %v601 = vrot.slane %v594, %v600
      %v603 = vunpack.c.l.s4 1966171168
      %v604 = vunpack.c.0.s8 %v603
      %v605 = vlaneseq
      %v606 = vshrl.u32 %v605, 7
      %v607 = vsub.s32 %v604, %v606
      %v608 = vrot.slane %v601, %v607
      %v610 = vadd.f32 %v591, %v608
      %611 = vst.msk [vmem:[%s590] ss:$8 sm:$0x3] %vm517, %v610
      %612 = vst.msk [vmem:[%s590] ss:$8 sm:$0x0] %vm517, %v610
      %v613 = vmul.f32 %v520, 0.25
      %v614 = vmul.f32 %v521, 0.25
      %v615 = vmul.f32 %v522, 0.25
      %v616 = vmul.f32 %v523, 0.25
      %v617 = vmax.f32 %v613, %v615
      %v618 = vrot.slane %v617, 4
      %v619 = vmax.f32 %v617, %v618
      %v620 = vrot.slane %v619, 2
      %v621 = vmax.f32 %v619, %v620
      %v622 = vrot.slane %v621, 1
      %v623 = vmax.f32 %v621, %v622
      %v624 = vmax.f32 %v614, %v616
      %v625 = vrot.slane %v624, 4
      %v626 = vmax.f32 %v624, %v625
      %v627 = vrot.slane %v626, 2
      %v628 = vmax.f32 %v626, %v627
      %v629 = vrot.slane %v628, 1
      %v630 = vmax.f32 %v628, %v629
      %v631 = vsub.f32 %v613, %v623
      %v632 = vsub.f32 %v614, %v630
      %v633 = vsub.f32 %v615, %v623
      %v634 = vsub.f32 %v616, %v630
      %v635 = vmul.f32 %v631, 1.442695
      %v636 = vpow.pop %v635
      %v637 = vmul.f32 %v632, 1.442695
      %v638 = vpow.pop %v637
      %v639 = vmul.f32 %v633, 1.442695
      %v640 = vpow.pop %v639
      %v641 = vmul.f32 %v634, 1.442695
      %v642 = vpow.pop %v641
      %v643 = vadd.f32 %v636, %v640
      %v644 = vrot.slane %v643, 4
      %v645 = vadd.f32 %v643, %v644
      %v646 = vrot.slane %v645, 2
      %v647 = vadd.f32 %v645, %v646
      %v648 = vrot.slane %v647, 1
      %v649 = vadd.f32 %v647, %v648
      %v650 = vadd.f32 %v638, %v642
      %v651 = vrot.slane %v650, 4
      %v652 = vadd.f32 %v650, %v651
      %v653 = vrot.slane %v652, 2
      %v654 = vadd.f32 %v652, %v653
      %v655 = vrot.slane %v654, 1
      %v656 = vadd.f32 %v654, %v655
      %v657 = vrcp.pop %v649
      %v658 = vrcp.pop %v656
      %v659 = vmul.f32 %v649, %v657
      %v660 = vmul.f32 %v656, %v658
      %v661 = vsub.f32 2.0, %v659
      %v662 = vsub.f32 2.0, %v660
      %v663 = vmul.f32 %v657, %v661
      %v664 = vmul.f32 %v658, %v662
      %v665 = vmul.f32 %v636, %v663
      %v666 = vmul.f32 %v638, %v664
      %v667 = vmul.f32 %v640, %v663
      %v668 = vmul.f32 %v642, %v664
      %v669 = vmul.f32 %v636, %v631
      %v670 = vmul.f32 %v638, %v632
      %v671 = vmul.f32 %v640, %v633
      %v672 = vmul.f32 %v642, %v634
      %v673 = vadd.f32 %v669, %v671
      %v674 = vrot.slane %v673, 4
      %v675 = vadd.f32 %v673, %v674
      %v676 = vrot.slane %v675, 2
      %v677 = vadd.f32 %v675, %v676
      %v678 = vrot.slane %v677, 1
      %v679 = vadd.f32 %v677, %v678
      %v680 = vadd.f32 %v670, %v672
      %v681 = vrot.slane %v680, 4
      %v682 = vadd.f32 %v680, %v681
      %v683 = vrot.slane %v682, 2
      %v684 = vadd.f32 %v682, %v683
      %v685 = vrot.slane %v684, 1
      %v686 = vadd.f32 %v684, %v685
      %v687 = vmul.f32 %v679, %v663
      %v688 = vmul.f32 %v686, %v664
      %v689 = vlog2.pop %v649
      %v690 = vmul.f32 %v689, 0.6931472
      %v691 = vlog2.pop %v656
      %v692 = vmul.f32 %v691, 0.6931472
      %v693 = vsub.f32 %v687, %v690
      %v694 = vsub.f32 %v688, %v692
      %v695 = vld [vmem:[%s377] sm:$0xff]
      %v696 = vld [vmem:[%s377 + $0x8] sm:$0xff]
      %v697 = vld [vmem:[%s377 + $0x10] sm:$0xff]
      %v698 = vld [vmem:[%s377 + $0x18] sm:$0xff]
      %v699 = vmax.f32 %v695, %v697
      %v700 = vrot.slane %v699, 4
      %v701 = vmax.f32 %v699, %v700
      %v702 = vrot.slane %v701, 2
      %v703 = vmax.f32 %v701, %v702
      %v704 = vrot.slane %v703, 1
      %v705 = vmax.f32 %v703, %v704
      %v706 = vmax.f32 %v696, %v698
      %v707 = vrot.slane %v706, 4
      %v708 = vmax.f32 %v706, %v707
      %v709 = vrot.slane %v708, 2
      %v710 = vmax.f32 %v708, %v709
      %v711 = vrot.slane %v710, 1
      %v712 = vmax.f32 %v710, %v711
      %v713 = vsub.f32 %v695, %v705
      %v714 = vsub.f32 %v696, %v712
      %v715 = vsub.f32 %v697, %v705
      %v716 = vsub.f32 %v698, %v712
      %v717 = vmul.f32 %v713, 1.442695
      %v718 = vpow.pop %v717
      %v719 = vmul.f32 %v714, 1.442695
      %v720 = vpow.pop %v719
      %v721 = vmul.f32 %v715, 1.442695
      %v722 = vpow.pop %v721
      %v723 = vmul.f32 %v716, 1.442695
      %v724 = vpow.pop %v723
      %v725 = vadd.f32 %v718, %v722
      %v726 = vrot.slane %v725, 4
      %v727 = vadd.f32 %v725, %v726
      %v728 = vrot.slane %v727, 2
      %v729 = vadd.f32 %v727, %v728
      %v730 = vrot.slane %v729, 1
      %v731 = vadd.f32 %v729, %v730
      %v732 = vadd.f32 %v720, %v724
      %v733 = vrot.slane %v732, 4
      %v734 = vadd.f32 %v732, %v733
      %v735 = vrot.slane %v734, 2
      %v736 = vadd.f32 %v734, %v735
      %v737 = vrot.slane %v736, 1
      %v738 = vadd.f32 %v736, %v737
      %v739 = vlog2.pop %v731
      %v740 = vmul.f32 %v739, 0.6931472
      %v741 = vlog2.pop %v738
      %v742 = vmul.f32 %v741, 0.6931472
      %v743 = vadd.f32 %v740, %v705
      %v744 = vadd.f32 %v742, %v712
      %v745 = vmul.f32 %v420, %v695
      %v746 = vmul.f32 %v421, %v696
      %v747 = vmul.f32 %v422, %v697
      %v748 = vmul.f32 %v423, %v698
      %v749 = vadd.f32 %v745, %v747
      %v750 = vrot.slane %v749, 4
      %v751 = vadd.f32 %v749, %v750
      %v752 = vrot.slane %v751, 2
      %v753 = vadd.f32 %v751, %v752
      %v754 = vrot.slane %v753, 1
      %v755 = vadd.f32 %v753, %v754
      %v756 = vadd.f32 %v746, %v748
      %v757 = vrot.slane %v756, 4
      %v758 = vadd.f32 %v756, %v757
      %v759 = vrot.slane %v758, 2
      %v760 = vadd.f32 %v758, %v759
      %v761 = vrot.slane %v760, 1
      %v762 = vadd.f32 %v760, %v761
      %v763 = vsub.f32 %v743, %v755
      %v764 = vsub.f32 %v744, %v762
      %s765 = scalar_lea.vmem %s393, 2
      %v766 = vld [vmem:[%s765] ss:$8 sm:$0x3]
      %v769 = vcombine.low %v763, %v764
      %v771 = vunpack.c.l.s4 1966171168
      %v772 = vunpack.c.0.s8 %v771
      %v773 = vlaneseq
      %v774 = vshrl.u32 %v773, 7
      %v775 = vsub.s32 %v772, %v774
      %v776 = vrot.slane %v769, %v775
      %v778 = vunpack.c.l.s4 1966171168
      %v779 = vunpack.c.0.s8 %v778
      %v780 = vlaneseq
      %v781 = vshrl.u32 %v780, 7
      %v782 = vsub.s32 %v779, %v781
      %v783 = vrot.slane %v776, %v782
      %v785 = vadd.f32 %v766, %v783
      %786 = vst.msk [vmem:[%s765] ss:$8 sm:$0x3] %vm517, %v785
      %787 = vst.msk [vmem:[%s765] ss:$8 sm:$0x0] %vm517, %v785
      %v788 = vmul.f32 %v695, 0.25
      %v789 = vmul.f32 %v696, 0.25
      %v790 = vmul.f32 %v697, 0.25
      %v791 = vmul.f32 %v698, 0.25
      %v792 = vmax.f32 %v788, %v790
      %v793 = vrot.slane %v792, 4
      %v794 = vmax.f32 %v792, %v793
      %v795 = vrot.slane %v794, 2
      %v796 = vmax.f32 %v794, %v795
      %v797 = vrot.slane %v796, 1
      %v798 = vmax.f32 %v796, %v797
      %v799 = vmax.f32 %v789, %v791
      %v800 = vrot.slane %v799, 4
      %v801 = vmax.f32 %v799, %v800
      %v802 = vrot.slane %v801, 2
      %v803 = vmax.f32 %v801, %v802
      %v804 = vrot.slane %v803, 1
      %v805 = vmax.f32 %v803, %v804
      %v806 = vsub.f32 %v788, %v798
      %v807 = vsub.f32 %v789, %v805
      %v808 = vsub.f32 %v790, %v798
      %v809 = vsub.f32 %v791, %v805
      %v810 = vmul.f32 %v806, 1.442695
      %v811 = vpow.pop %v810
      %v812 = vmul.f32 %v807, 1.442695
      %v813 = vpow.pop %v812
      %v814 = vmul.f32 %v808, 1.442695
      %v815 = vpow.pop %v814
      %v816 = vmul.f32 %v809, 1.442695
      %v817 = vpow.pop %v816
      %v818 = vadd.f32 %v811, %v815
      %v819 = vrot.slane %v818, 4
      %v820 = vadd.f32 %v818, %v819
      %v821 = vrot.slane %v820, 2
      %v822 = vadd.f32 %v820, %v821
      %v823 = vrot.slane %v822, 1
      %v824 = vadd.f32 %v822, %v823
      %v825 = vadd.f32 %v813, %v817
      %v826 = vrot.slane %v825, 4
      %v827 = vadd.f32 %v825, %v826
      %v828 = vrot.slane %v827, 2
      %v829 = vadd.f32 %v827, %v828
      %v830 = vrot.slane %v829, 1
      %v831 = vadd.f32 %v829, %v830
      %v832 = vlog2.pop %v824
      %v833 = vmul.f32 %v832, 0.6931472
      %v834 = vlog2.pop %v831
      %v835 = vmul.f32 %v834, 0.6931472
      %v836 = vadd.f32 %v833, %v798
      %v837 = vadd.f32 %v835, %v805
      %v838 = vmul.f32 %v665, %v788
      %v839 = vmul.f32 %v666, %v789
      %v840 = vmul.f32 %v667, %v790
      %v841 = vmul.f32 %v668, %v791
      %v842 = vadd.f32 %v838, %v840
      %v843 = vrot.slane %v842, 4
      %v844 = vadd.f32 %v842, %v843
      %v845 = vrot.slane %v844, 2
      %v846 = vadd.f32 %v844, %v845
      %v847 = vrot.slane %v846, 1
      %v848 = vadd.f32 %v846, %v847
      %v849 = vadd.f32 %v839, %v841
      %v850 = vrot.slane %v849, 4
      %v851 = vadd.f32 %v849, %v850
      %v852 = vrot.slane %v851, 2
      %v853 = vadd.f32 %v851, %v852
      %v854 = vrot.slane %v853, 1
      %v855 = vadd.f32 %v853, %v854
      %v856 = vsub.f32 %v693, %v848
      %v857 = vsub.f32 %v694, %v855
      %v858 = vadd.f32 %v856, %v836
      %v859 = vadd.f32 %v857, %v837
      %s860 = scalar_lea.vmem %s393, 4
      %v861 = vld [vmem:[%s860] ss:$8 sm:$0x3]
      %v864 = vcombine.low %v858, %v859
      %v866 = vunpack.c.l.s4 1966171168
      %v867 = vunpack.c.0.s8 %v866
      %v868 = vlaneseq
      %v869 = vshrl.u32 %v868, 7
      %v870 = vsub.s32 %v867, %v869
      %v871 = vrot.slane %v864, %v870
      %v873 = vunpack.c.l.s4 1966171168
      %v874 = vunpack.c.0.s8 %v873
      %v875 = vlaneseq
      %v876 = vshrl.u32 %v875, 7
      %v877 = vsub.s32 %v874, %v876
      %v878 = vrot.slane %v871, %v877
      %v880 = vadd.f32 %v861, %v878
      %881 = vst.msk [vmem:[%s860] ss:$8 sm:$0x3] %vm517, %v880
      %882 = vst.msk [vmem:[%s860] ss:$8 sm:$0x0] %vm517, %v880
      %v883 = vld [vmem:[%s387] sm:$0xff]
      %v884 = vld [vmem:[%s387 + $0x8] sm:$0xff]
      %v885 = vld [vmem:[%s387 + $0x10] sm:$0xff]
      %v886 = vld [vmem:[%s387 + $0x18] sm:$0xff]
      %v887 = vmax.f32 %v883, %v885
      %v888 = vrot.slane %v887, 4
      %v889 = vmax.f32 %v887, %v888
      %v890 = vrot.slane %v889, 2
      %v891 = vmax.f32 %v889, %v890
      %v892 = vrot.slane %v891, 1
      %v893 = vmax.f32 %v891, %v892
      %v894 = vmax.f32 %v884, %v886
      %v895 = vrot.slane %v894, 4
      %v896 = vmax.f32 %v894, %v895
      %v897 = vrot.slane %v896, 2
      %v898 = vmax.f32 %v896, %v897
      %v899 = vrot.slane %v898, 1
      %v900 = vmax.f32 %v898, %v899
      %v901 = vsub.f32 %v883, %v893
      %v902 = vsub.f32 %v884, %v900
      %v903 = vsub.f32 %v885, %v893
      %v904 = vsub.f32 %v886, %v900
      %v905 = vmul.f32 %v901, 1.442695
      %v906 = vpow.pop %v905
      %v907 = vmul.f32 %v902, 1.442695
      %v908 = vpow.pop %v907
      %v909 = vmul.f32 %v903, 1.442695
      %v910 = vpow.pop %v909
      %v911 = vmul.f32 %v904, 1.442695
      %v912 = vpow.pop %v911
      %v913 = vadd.f32 %v906, %v910
      %v914 = vrot.slane %v913, 4
      %v915 = vadd.f32 %v913, %v914
      %v916 = vrot.slane %v915, 2
      %v917 = vadd.f32 %v915, %v916
      %v918 = vrot.slane %v917, 1
      %v919 = vadd.f32 %v917, %v918
      %v920 = vadd.f32 %v908, %v912
      %v921 = vrot.slane %v920, 4
      %v922 = vadd.f32 %v920, %v921
      %v923 = vrot.slane %v922, 2
      %v924 = vadd.f32 %v922, %v923
      %v925 = vrot.slane %v924, 1
      %v926 = vadd.f32 %v924, %v925
      %v927 = vlog2.pop %v919
      %v928 = vmul.f32 %v927, 0.6931472
      %v929 = vlog2.pop %v926
      %v930 = vmul.f32 %v929, 0.6931472
      %v931 = vadd.f32 %v928, %v893
      %v932 = vadd.f32 %v930, %v900
      %v933 = vmul.f32 %v420, %v883
      %v934 = vmul.f32 %v421, %v884
      %v935 = vmul.f32 %v422, %v885
      %v936 = vmul.f32 %v423, %v886
      %v937 = vadd.f32 %v933, %v935
      %v938 = vrot.slane %v937, 4
      %v939 = vadd.f32 %v937, %v938
      %v940 = vrot.slane %v939, 2
      %v941 = vadd.f32 %v939, %v940
      %v942 = vrot.slane %v941, 1
      %v943 = vadd.f32 %v941, %v942
      %v944 = vadd.f32 %v934, %v936
      %v945 = vrot.slane %v944, 4
      %v946 = vadd.f32 %v944, %v945
      %v947 = vrot.slane %v946, 2
      %v948 = vadd.f32 %v946, %v947
      %v949 = vrot.slane %v948, 1
      %v950 = vadd.f32 %v948, %v949
      %v951 = vsub.f32 %v931, %v943
      %v952 = vsub.f32 %v932, %v950
      %s953 = scalar_lea.vmem %s393, 3
      %v954 = vld [vmem:[%s953] ss:$8 sm:$0x3]
      %v957 = vcombine.low %v951, %v952
      %v959 = vunpack.c.l.s4 1966171168
      %v960 = vunpack.c.0.s8 %v959
      %v961 = vlaneseq
      %v962 = vshrl.u32 %v961, 7
      %v963 = vsub.s32 %v960, %v962
      %v964 = vrot.slane %v957, %v963
      %v966 = vunpack.c.l.s4 1966171168
      %v967 = vunpack.c.0.s8 %v966
      %v968 = vlaneseq
      %v969 = vshrl.u32 %v968, 7
      %v970 = vsub.s32 %v967, %v969
      %v971 = vrot.slane %v964, %v970
      %v973 = vadd.f32 %v954, %v971
      %974 = vst.msk [vmem:[%s953] ss:$8 sm:$0x3] %vm517, %v973
      %975 = vst.msk [vmem:[%s953] ss:$8 sm:$0x0] %vm517, %v973
      %v976 = vmul.f32 %v883, 0.25
      %v977 = vmul.f32 %v884, 0.25
      %v978 = vmul.f32 %v885, 0.25
      %v979 = vmul.f32 %v886, 0.25
      %v980 = vmax.f32 %v976, %v978
      %v981 = vrot.slane %v980, 4
      %v982 = vmax.f32 %v980, %v981
      %v983 = vrot.slane %v982, 2
      %v984 = vmax.f32 %v982, %v983
      %v985 = vrot.slane %v984, 1
      %v986 = vmax.f32 %v984, %v985
      %v987 = vmax.f32 %v977, %v979
      %v988 = vrot.slane %v987, 4
      %v989 = vmax.f32 %v987, %v988
      %v990 = vrot.slane %v989, 2
      %v991 = vmax.f32 %v989, %v990
      %v992 = vrot.slane %v991, 1
      %v993 = vmax.f32 %v991, %v992
      %v994 = vsub.f32 %v976, %v986
      %v995 = vsub.f32 %v977, %v993
      %v996 = vsub.f32 %v978, %v986
      %v997 = vsub.f32 %v979, %v993
      %v998 = vmul.f32 %v994, 1.442695
      %v999 = vpow.pop %v998
      %v1000 = vmul.f32 %v995, 1.442695
      %v1001 = vpow.pop %v1000
      %v1002 = vmul.f32 %v996, 1.442695
      %v1003 = vpow.pop %v1002
      %v1004 = vmul.f32 %v997, 1.442695
      %v1005 = vpow.pop %v1004
      %v1006 = vadd.f32 %v999, %v1003
      %v1007 = vrot.slane %v1006, 4
      %v1008 = vadd.f32 %v1006, %v1007
      %v1009 = vrot.slane %v1008, 2
      %v1010 = vadd.f32 %v1008, %v1009
      %v1011 = vrot.slane %v1010, 1
      %v1012 = vadd.f32 %v1010, %v1011
      %v1013 = vadd.f32 %v1001, %v1005
      %v1014 = vrot.slane %v1013, 4
      %v1015 = vadd.f32 %v1013, %v1014
      %v1016 = vrot.slane %v1015, 2
      %v1017 = vadd.f32 %v1015, %v1016
      %v1018 = vrot.slane %v1017, 1
      %v1019 = vadd.f32 %v1017, %v1018
      %v1020 = vlog2.pop %v1012
      %v1021 = vmul.f32 %v1020, 0.6931472
      %v1022 = vlog2.pop %v1019
      %v1023 = vmul.f32 %v1022, 0.6931472
      %v1024 = vadd.f32 %v1021, %v986
      %v1025 = vadd.f32 %v1023, %v993
      %v1026 = vmul.f32 %v665, %v976
      %v1027 = vmul.f32 %v666, %v977
      %v1028 = vmul.f32 %v667, %v978
      %v1029 = vmul.f32 %v668, %v979
      %v1030 = vadd.f32 %v1026, %v1028
      %v1031 = vrot.slane %v1030, 4
      %v1032 = vadd.f32 %v1030, %v1031
      %v1033 = vrot.slane %v1032, 2
      %v1034 = vadd.f32 %v1032, %v1033
      %v1035 = vrot.slane %v1034, 1
      %v1036 = vadd.f32 %v1034, %v1035
      %v1037 = vadd.f32 %v1027, %v1029
      %v1038 = vrot.slane %v1037, 4
      %v1039 = vadd.f32 %v1037, %v1038
      %v1040 = vrot.slane %v1039, 2
      %v1041 = vadd.f32 %v1039, %v1040
      %v1042 = vrot.slane %v1041, 1
      %v1043 = vadd.f32 %v1041, %v1042
      %v1044 = vsub.f32 %v693, %v1036
      %v1045 = vsub.f32 %v694, %v1043
      %v1046 = vadd.f32 %v1044, %v1024
      %v1047 = vadd.f32 %v1045, %v1025
      %s1048 = scalar_lea.vmem %s393, 5
      %v1049 = vld [vmem:[%s1048] ss:$8 sm:$0x3]
      %v1052 = vcombine.low %v1046, %v1047
      %v1054 = vunpack.c.l.s4 1966171168
      %v1055 = vunpack.c.0.s8 %v1054
      %v1056 = vlaneseq
      %v1057 = vshrl.u32 %v1056, 7
      %v1058 = vsub.s32 %v1055, %v1057
      %v1059 = vrot.slane %v1052, %v1058
      %v1061 = vunpack.c.l.s4 1966171168
      %v1062 = vunpack.c.0.s8 %v1061
      %v1063 = vlaneseq
      %v1064 = vshrl.u32 %v1063, 7
      %v1065 = vsub.s32 %v1062, %v1064
      %v1066 = vrot.slane %v1059, %v1065
      %v1068 = vadd.f32 %v1049, %v1066
      %1069 = vst.msk [vmem:[%s1048] ss:$8 sm:$0x3] %vm517, %v1068
      %1070 = vst.msk [vmem:[%s1048] ss:$8 sm:$0x0] %vm517, %v1068
      %p1071 = scmp.lt.s32.totalorder %s20, 1
      %s1072 = scalar_select %p1071, %s20, 1
      %s1073 = smul.addr %s1072, 2
      %s1074 = smul.addr %s1073, 8
      %s1075 = scalar_lea.vmem %s5, %s1074
      // Predicated region
      $region45: #{_fused_losses.1} parent=39 // pred_check
        %p1076 = pneg %p186
      $region46: #{_fused_losses.1} parent=39 // pred_check_branch
        %1078 = sbr.rel (%p1076) target = $region48
      $region47: #{_fused_losses.1} parent=39 // pred_region
        _
      $region48: #{_fused_losses.1} parent=39 // pred_fallthru
        _
    $region40: #{_fused_losses.1} parent=5 // pred_fallthru
      _
    %p1079 = scmp.le.s32.totalorder 2, %s11
    // Predicated region
    $region49: #{_fused_losses.1} parent=5 // pred_check
      %p1080 = pneg %p1079
    $region50: #{_fused_losses.1} parent=5 // pred_check_branch
      %1082 = sbr.rel (%p1080) target = $region52
    $region51: #{_fused_losses.1} parent=5 // pred_region
      %s1083 = ssub.s32 %s11, 2
      // Predicated region
      $region53: #{_fused_losses.1} parent=51 // pred_check
        %p1084 = pneg %p192
      $region54: #{_fused_losses.1} parent=51 // pred_check_branch
        %1086 = sbr.rel (%p1084) target = $region56
      $region55: #{_fused_losses.1} parent=51 // pred_region
        %p1087 = scmp.lt.s32.totalorder %s22, 1
        %s1088 = scalar_select %p1087, %s22, 1
        %s1089 = smul.addr %s1088, 2
        %s1090 = smul.addr %s1089, 8
        %s1091 = scalar_lea.vmem %s5, %s1090
      $region56: #{_fused_losses.1} parent=51 // pred_fallthru
        _
    $region52: #{_fused_losses.1} parent=5 // pred_fallthru
      _
  $region6: #{_fused_losses.1} parent=0 // loop_footer
    %s15 = sadd.s32 1, %s11
  $region7: #{_fused_losses.1} parent=0 // loop_footer_branch
    %10 = sbr.rel target = $region3
  $region8: #{_fused_losses.1} parent=0 // loop_exit
    _

</llo_original>
